<compile_context>
chip_gen: v6e
topology: v6e:2x2x1
jax: 0.10.0
libtpu: 0.0.40
codegen_flags: <defaults>
</compile_context>

<pallas_src>
import functools

import jax
import jax.numpy as jnp
import numpy as np
from jax.experimental import pallas as pl
from jax.experimental.pallas import tpu as pltpu


def _round_up(v, m):
    return ((v + m - 1) // m) * m


# ---------------------------------------------------------------------------
# One-time hardware / feature probes (cached at module level).
# ---------------------------------------------------------------------------
try:
    _VMEM_PHYS_BYTES = int(pltpu.get_tpu_info().vmem_capacity_bytes)
except Exception:  # older JAX or non-TPU trace context: assume v5e/v6e capacity
    _VMEM_PHYS_BYTES = 128 << 20

# Leave ~20% headroom for compiler scratch / semaphores:
#   v7x (64 MiB phys) -> ~51 MiB ceiling, v5e/v6e (128 MiB) -> ~102 MiB ceiling.
_VMEM_CEILING_BYTES = max(16 << 20, int(_VMEM_PHYS_BYTES * 0.8))

_BUFFERED1_SUPPORTED = None


def _buffered1_supported():
    """Probe ONCE whether pl.Buffered(1) (single-buffered grid-invariant blocks) lowers."""
    global _BUFFERED1_SUPPORTED
    if _BUFFERED1_SUPPORTED is None:
        try:
            def _k(x_ref, o_ref):
                o_ref[...] = x_ref[...]

            spec = pl.BlockSpec((8, 128), lambda i: (0, 0),
                                pipeline_mode=pl.Buffered(1))
            fn = pl.pallas_call(
                _k,
                out_shape=jax.ShapeDtypeStruct((8, 128), jnp.float32),
                grid=(1,),
                in_specs=[spec],
                out_specs=pl.BlockSpec((8, 128), lambda i: (0, 0)),
            )
            jax.jit(fn).lower(jnp.zeros((8, 128), jnp.float32)).compile()
            _BUFFERED1_SUPPORTED = True
        except Exception:
            _BUFFERED1_SUPPORTED = False
    return _BUFFERED1_SUPPORTED


# ---------------------------------------------------------------------------
# Kernel: whole 4-layer MLP fused for one (lane-padded) batch tile.
# ---------------------------------------------------------------------------
def mlp_kernel(x_ref,
               w1_ref, b1_ref,
               w2_ref, b2_ref,
               w3_ref, b3_ref,
               w4_ref, b4_ref,
               o_ref):
    cdt = w1_ref.dtype  # matmul operand dtype (bf16 or f32); accumulation stays f32
    x = x_ref[...]

    h = jnp.dot(x, w1_ref[...], preferred_element_type=jnp.float32) + b1_ref[...]
    h = jnp.maximum(h, 0.0)

    h = jnp.dot(h.astype(cdt), w2_ref[...], preferred_element_type=jnp.float32) + b2_ref[...]
    h = jnp.maximum(h, 0.0)

    h = jnp.dot(h.astype(cdt), w3_ref[...], preferred_element_type=jnp.float32) + b3_ref[...]
    h = jnp.maximum(h, 0.0)

    y = jnp.dot(h.astype(cdt), w4_ref[...], preferred_element_type=jnp.float32) + b4_ref[...]
    o_ref[...] = y.astype(o_ref.dtype)


# ---------------------------------------------------------------------------
# One-time parameter preparation (padding + casting) — hoisted out of forward.
# ---------------------------------------------------------------------------
def prepare_params(params, compute_dtype=jnp.bfloat16):
    """Pad every feature dim to a multiple of 128 lanes and cast weights to compute_dtype.

    Call once per parameter set. Zero padding is exact: padded weight rows/cols and
    padded bias entries are 0, so padded activation columns stay 0 through every layer.
    Biases stay f32 (post-matmul math runs in f32)."""
    cdt = jnp.dtype(compute_dtype)

    def bias2d(b):
        return b.reshape(1, -1)

    w1, b1 = params["w1"], bias2d(params["b1"])   # (F_in, 2F), (1, 2F)
    w2, b2 = params["w2"], bias2d(params["b2"])   # (2F, 2F),   (1, 2F)
    w3, b3 = params["w3"], bias2d(params["b3"])   # (2F, F_in), (1, F_in)
    w4, b4 = params["w4"], bias2d(params["b4"])   # (F_in, out),(1, out)

    F_in, H = w1.shape
    F_out = w4.shape[1]
    F_in_p = _round_up(F_in, 128)
    H_p = _round_up(H, 128)
    F_out_p = _round_up(F_out, 128)

    def pad2(a, r, c, dtype):
        return jnp.pad(a, ((0, r - a.shape[0]), (0, c - a.shape[1]))).astype(dtype)

    arrays = (
        pad2(w1, F_in_p, H_p, cdt),     pad2(b1, 1, H_p, jnp.float32),
        pad2(w2, H_p, H_p, cdt),        pad2(b2, 1, H_p, jnp.float32),
        pad2(w3, H_p, F_in_p, cdt),     pad2(b3, 1, F_in_p, jnp.float32),
        pad2(w4, F_in_p, F_out_p, cdt), pad2(b4, 1, F_out_p, jnp.float32),
    )
    return {"arrays": arrays, "in_features": F_in, "out_features": F_out}


# ---------------------------------------------------------------------------
# Jitted forward — only x is padded/cast per call.
# ---------------------------------------------------------------------------
@functools.partial(jax.jit,
                   static_argnames=("out_features", "batch_tile", "single_buffer"))
def _forward(x, w1p, b1p, w2p, b2p, w3p, b3p, w4p, b4p, *,
             out_features, batch_tile, single_buffer):
    B, F_in = x.shape
    F_in_p, H_p = w1p.shape
    F_out_p = w4p.shape[1]
    out_dtype = x.dtype
    cdt = w1p.dtype

    # ---- batch tiling ---------------------------------------------------------
    if batch_tile is None:
        batch_tile = min(_round_up(max(B, 8), 8), 1024)
        # Guarantee >=2 grid steps when the batch is big enough to split, so both
        # v7x TensorCores get work (harmless on single-TC v5e/v6e).
        if B >= 16 and _round_up(B, batch_tile) // batch_tile < 2:
            batch_tile = max(8, _round_up((B + 1) // 2, 8))
    batch_tile = max(8, _round_up(int(batch_tile), 8))
    B_p = _round_up(B, batch_tile)
    grid = (B_p // batch_tile,)

    x_p = jnp.pad(x, ((0, B_p - B), (0, F_in_p - F_in))).astype(cdt)

    # ---- VMEM budget & cost estimate -------------------------------------------
    def nbytes(a):
        return a.size * a.dtype.itemsize

    param_bytes = sum(nbytes(a) for a in (w1p, b1p, w2p, b2p, w3p, b3p, w4p, b4p))
    x_tile_bytes = batch_tile * F_in_p * cdt.itemsize
    out_tile_bytes = batch_tile * F_out_p * jnp.dtype(out_dtype).itemsize
    act_bytes = 4 * batch_tile * H_p * 4  # f32 intermediates, generous
    param_mult = 1 if single_buffer else 2
    needed = 2 * (x_tile_bytes + out_tile_bytes) + param_mult * param_bytes + act_bytes
    vmem_limit_bytes = int(min(max(needed + (2 << 20), 16 << 20), _VMEM_CEILING_BYTES))
    # TODO(synk): add a hidden-dim-tiled path (grid axis over H with an f32 VMEM
    # accumulator) once resident padded weights exceed the VMEM ceiling (F ~> 1k on v7x).

    flops = 2 * B_p * (F_in_p * H_p + H_p * H_p + H_p * F_in_p + F_in_p * F_out_p)
    bytes_accessed = nbytes(x_p) + B_p * F_out_p * jnp.dtype(out_dtype).itemsize + param_bytes
    cost = pl.CostEstimate(flops=flops, transcendentals=0, bytes_accessed=bytes_accessed)

    def x_map(i):
        return (i, 0)

    def param_map(i):
        return (0, 0)

    if single_buffer:
        def pspec(shape):
            # Grid-invariant blocks: no point double-buffering them.
            return pl.BlockSpec(shape, param_map, pipeline_mode=pl.Buffered(1))
    else:
        def pspec(shape):
            return pl.BlockSpec(shape, param_map)

    out_p = pl.pallas_call(
        mlp_kernel,
        out_shape=jax.ShapeDtypeStruct((B_p, F_out_p), out_dtype),
        grid_spec=pltpu.PrefetchScalarGridSpec(
            num_scalar_prefetch=0,
            grid=grid,
            in_specs=[
                pl.BlockSpec((batch_tile, F_in_p), x_map),   # x tile
                pspec(w1p.shape), pspec(b1p.shape),
                pspec(w2p.shape), pspec(b2p.shape),
                pspec(w3p.shape), pspec(b3p.shape),
                pspec(w4p.shape), pspec(b4p.shape),
            ],
            out_specs=pl.BlockSpec((batch_tile, F_out_p), x_map),
        ),
        compiler_params=pltpu.CompilerParams(
            dimension_semantics=("parallel",),
            vmem_limit_bytes=vmem_limit_bytes,
        ),
        cost_estimate=cost,
    )(x_p, w1p, b1p, w2p, b2p, w3p, b3p, w4p, b4p)

    return out_p[:B, :out_features]


def ann_maze_forward(x, prepared, *, batch_tile=None):
    """x: (B, inputs). prepared: output of prepare_params(params)."""
    return _forward(x, *prepared["arrays"],
                    out_features=prepared["out_features"],
                    batch_tile=batch_tile,
                    single_buffer=_buffered1_supported())


# ---------------------------------------------------------------------------
# Parameter init & pure-JAX reference.
# ---------------------------------------------------------------------------
def init_params(key, inputs, outputs, dtype=jnp.float32):
    """Deterministic init matching nn.Linear shapes (weights stored transposed)."""
    def linear(k, fan_in, fan_out):
        kw, kb = jax.random.split(k)
        bound = 1.0 / np.sqrt(fan_in)
        # stored as (fan_in, fan_out) == PyTorch weight (fan_out, fan_in) transposed
        w = jax.random.uniform(kw, (fan_in, fan_out), dtype, -bound, bound)
        b = jax.random.uniform(kb, (1, fan_out), dtype, -bound, bound)
        return w, b

    k1, k2, k3, k4 = jax.random.split(key, 4)
    w1, b1 = linear(k1, inputs, inputs * 2)
    w2, b2 = linear(k2, inputs * 2, inputs * 2)
    w3, b3 = linear(k3, inputs * 2, inputs)
    w4, b4 = linear(k4, inputs, outputs)
    return dict(w1=w1, b1=b1, w2=w2, b2=b2, w3=w3, b3=b3, w4=w4, b4=b4)


def ann_maze_reference(x, p):
    h = jax.nn.relu(x @ p["w1"] + p["b1"])
    h = jax.nn.relu(h @ p["w2"] + p["b2"])
    h = jax.nn.relu(h @ p["w3"] + p["b3"])
    return h @ p["w4"] + p["b4"]


if __name__ == "__main__":
    key = jax.random.PRNGKey(0)
    k_x, k_p = jax.random.split(key)

    batch, inputs, outputs = 16, 32, 8
    x = jax.random.normal(k_x, (batch, inputs), jnp.float32)
    params = init_params(k_p, inputs, outputs)
    ref = ann_maze_reference(x, params)

    # f32 compute path: exact correctness check against the pure-JAX reference.
    prep_f32 = prepare_params(params, compute_dtype=jnp.float32)
    out_f32 = jax.block_until_ready(ann_maze_forward(x, prep_f32))
    np.testing.assert_allclose(np.asarray(out_f32), np.asarray(ref), rtol=1e-5, atol=1e-5)

    # Default bf16 compute path (f32 accumulation / bias / ReLU): loose-tolerance check.
    prep_bf16 = prepare_params(params)  # compute_dtype defaults to bfloat16
    out_bf16 = jax.block_until_ready(ann_maze_forward(x, prep_bf16))
    np.testing.assert_allclose(np.asarray(out_bf16), np.asarray(ref), rtol=5e-2, atol=1e-1)

    print("KERNEL_OK")
</pallas_src>

<mosaic_0001>
module attributes {stable_mosaic.version = 11 : i64} {
  func.func @mlp_kernel(%arg0: i32, %arg1: memref<8x128xf32, #tpu.memory_space<vmem>>, %arg2: memref<128x128xf32, #tpu.memory_space<vmem>>, %arg3: memref<1x128xf32, #tpu.memory_space<vmem>>, %arg4: memref<128x128xf32, #tpu.memory_space<vmem>>, %arg5: memref<1x128xf32, #tpu.memory_space<vmem>>, %arg6: memref<128x128xf32, #tpu.memory_space<vmem>>, %arg7: memref<1x128xf32, #tpu.memory_space<vmem>>, %arg8: memref<128x128xf32, #tpu.memory_space<vmem>>, %arg9: memref<1x128xf32, #tpu.memory_space<vmem>>, %arg10: memref<8x128xf32, #tpu.memory_space<vmem>>) attributes {dimension_semantics = [#tpu.dimension_semantics<parallel>], iteration_bounds = array<i64: 2>, scalar_prefetch = 0 : i64, scratch_operands = 0 : i64, tpu.core_type = #tpu.core_type<tc>, window_params = [{transform_indices = @transform_0, window_bounds = array<i64: 8, 128>}, {pipeline_mode = #tpu.pipeline_mode<synchronous>, transform_indices = @transform_1, window_bounds = array<i64: 128, 128>}, {pipeline_mode = #tpu.pipeline_mode<synchronous>, transform_indices = @transform_2, window_bounds = array<i64: 1, 128>}, {pipeline_mode = #tpu.pipeline_mode<synchronous>, transform_indices = @transform_3, window_bounds = array<i64: 128, 128>}, {pipeline_mode = #tpu.pipeline_mode<synchronous>, transform_indices = @transform_4, window_bounds = array<i64: 1, 128>}, {pipeline_mode = #tpu.pipeline_mode<synchronous>, transform_indices = @transform_5, window_bounds = array<i64: 128, 128>}, {pipeline_mode = #tpu.pipeline_mode<synchronous>, transform_indices = @transform_6, window_bounds = array<i64: 1, 128>}, {pipeline_mode = #tpu.pipeline_mode<synchronous>, transform_indices = @transform_7, window_bounds = array<i64: 128, 128>}, {pipeline_mode = #tpu.pipeline_mode<synchronous>, transform_indices = @transform_8, window_bounds = array<i64: 1, 128>}, {transform_indices = @transform_9, window_bounds = array<i64: 8, 128>}]} {
    %c0 = arith.constant 0 : index
    %c0_0 = arith.constant 0 : index
    %0 = vector.load %arg1[%c0, %c0_0] : memref<8x128xf32, #tpu.memory_space<vmem>>, vector<8x128xf32>
    %c0_1 = arith.constant 0 : index
    %c0_2 = arith.constant 0 : index
    %1 = vector.load %arg2[%c0_1, %c0_2] : memref<128x128xf32, #tpu.memory_space<vmem>>, vector<128x128xf32>
    %cst = arith.constant dense<0.000000e+00> : vector<8x128xf32>
    %2 = tpu.matmul %0, %1, %cst {dimension_numbers = #tpu.dot_dimension_numbers<[1], [0], [0], [1], [0, 0, 1, 1], [], []>} : vector<8x128xf32>, vector<128x128xf32>, vector<8x128xf32> -> vector<8x128xf32>
    %c0_3 = arith.constant 0 : index
    %c0_4 = arith.constant 0 : index
    %3 = vector.load %arg3[%c0_3, %c0_4] : memref<1x128xf32, #tpu.memory_space<vmem>>, vector<1x128xf32>
    %4 = vector.broadcast %3 : vector<1x128xf32> to vector<8x128xf32>
    %5 = arith.addf %2, %4 : vector<8x128xf32>
    %cst_5 = arith.constant 0.000000e+00 : f32
    %6 = vector.broadcast %cst_5 : f32 to vector<8x128xf32>
    %7 = arith.maximumf %5, %6 : vector<8x128xf32>
    %c0_6 = arith.constant 0 : index
    %c0_7 = arith.constant 0 : index
    %8 = vector.load %arg4[%c0_6, %c0_7] : memref<128x128xf32, #tpu.memory_space<vmem>>, vector<128x128xf32>
    %cst_8 = arith.constant dense<0.000000e+00> : vector<8x128xf32>
    %9 = tpu.matmul %7, %8, %cst_8 {dimension_numbers = #tpu.dot_dimension_numbers<[1], [0], [0], [1], [0, 0, 1, 1], [], []>} : vector<8x128xf32>, vector<128x128xf32>, vector<8x128xf32> -> vector<8x128xf32>
    %c0_9 = arith.constant 0 : index
    %c0_10 = arith.constant 0 : index
    %10 = vector.load %arg5[%c0_9, %c0_10] : memref<1x128xf32, #tpu.memory_space<vmem>>, vector<1x128xf32>
    %11 = vector.broadcast %10 : vector<1x128xf32> to vector<8x128xf32>
    %12 = arith.addf %9, %11 : vector<8x128xf32>
    %cst_11 = arith.constant 0.000000e+00 : f32
    %13 = vector.broadcast %cst_11 : f32 to vector<8x128xf32>
    %14 = arith.maximumf %12, %13 : vector<8x128xf32>
    %c0_12 = arith.constant 0 : index
    %c0_13 = arith.constant 0 : index
    %15 = vector.load %arg6[%c0_12, %c0_13] : memref<128x128xf32, #tpu.memory_space<vmem>>, vector<128x128xf32>
    %cst_14 = arith.constant dense<0.000000e+00> : vector<8x128xf32>
    %16 = tpu.matmul %14, %15, %cst_14 {dimension_numbers = #tpu.dot_dimension_numbers<[1], [0], [0], [1], [0, 0, 1, 1], [], []>} : vector<8x128xf32>, vector<128x128xf32>, vector<8x128xf32> -> vector<8x128xf32>
    %c0_15 = arith.constant 0 : index
    %c0_16 = arith.constant 0 : index
    %17 = vector.load %arg7[%c0_15, %c0_16] : memref<1x128xf32, #tpu.memory_space<vmem>>, vector<1x128xf32>
    %18 = vector.broadcast %17 : vector<1x128xf32> to vector<8x128xf32>
    %19 = arith.addf %16, %18 : vector<8x128xf32>
    %cst_17 = arith.constant 0.000000e+00 : f32
    %20 = vector.broadcast %cst_17 : f32 to vector<8x128xf32>
    %21 = arith.maximumf %19, %20 : vector<8x128xf32>
    %c0_18 = arith.constant 0 : index
    %c0_19 = arith.constant 0 : index
    %22 = vector.load %arg8[%c0_18, %c0_19] : memref<128x128xf32, #tpu.memory_space<vmem>>, vector<128x128xf32>
    %cst_20 = arith.constant dense<0.000000e+00> : vector<8x128xf32>
    %23 = tpu.matmul %21, %22, %cst_20 {dimension_numbers = #tpu.dot_dimension_numbers<[1], [0], [0], [1], [0, 0, 1, 1], [], []>} : vector<8x128xf32>, vector<128x128xf32>, vector<8x128xf32> -> vector<8x128xf32>
    %c0_21 = arith.constant 0 : index
    %c0_22 = arith.constant 0 : index
    %24 = vector.load %arg9[%c0_21, %c0_22] : memref<1x128xf32, #tpu.memory_space<vmem>>, vector<1x128xf32>
    %25 = vector.broadcast %24 : vector<1x128xf32> to vector<8x128xf32>
    %26 = arith.addf %23, %25 : vector<8x128xf32>
    %c0_23 = arith.constant 0 : index
    %c0_24 = arith.constant 0 : index
    %27 = vector.load %arg10[%c0_23, %c0_24] : memref<8x128xf32, #tpu.memory_space<vmem>>, vector<8x128xf32>
    tpu.vector_store %arg10[%c0_23, %c0_24], %26 {strides = array<i32>} : memref<8x128xf32, #tpu.memory_space<vmem>>, vector<8x128xf32>,
    return
  }
  func.func @transform_0(%arg0: i32) -> (i32, i32) {
    %c0_i32 = arith.constant 0 : i32
    %c0_i32_0 = arith.constant 0 : i32
    return %arg0, %c0_i32 : i32, i32
  }
  func.func @transform_1(%arg0: i32) -> (i32, i32) {
    %c0_i32 = arith.constant 0 : i32
    %c0_i32_0 = arith.constant 0 : i32
    %c0_i32_1 = arith.constant 0 : i32
    return %c0_i32, %c0_i32_0 : i32, i32
  }
  func.func @transform_2(%arg0: i32) -> (i32, i32) {
    %c0_i32 = arith.constant 0 : i32
    %c0_i32_0 = arith.constant 0 : i32
    %c0_i32_1 = arith.constant 0 : i32
    return %c0_i32, %c0_i32_0 : i32, i32
  }
  func.func @transform_3(%arg0: i32) -> (i32, i32) {
    %c0_i32 = arith.constant 0 : i32
    %c0_i32_0 = arith.constant 0 : i32
    %c0_i32_1 = arith.constant 0 : i32
    return %c0_i32, %c0_i32_0 : i32, i32
  }
  func.func @transform_4(%arg0: i32) -> (i32, i32) {
    %c0_i32 = arith.constant 0 : i32
    %c0_i32_0 = arith.constant 0 : i32
    %c0_i32_1 = arith.constant 0 : i32
    return %c0_i32, %c0_i32_0 : i32, i32
  }
  func.func @transform_5(%arg0: i32) -> (i32, i32) {
    %c0_i32 = arith.constant 0 : i32
    %c0_i32_0 = arith.constant 0 : i32
    %c0_i32_1 = arith.constant 0 : i32
    return %c0_i32, %c0_i32_0 : i32, i32
  }
  func.func @transform_6(%arg0: i32) -> (i32, i32) {
    %c0_i32 = arith.constant 0 : i32
    %c0_i32_0 = arith.constant 0 : i32
    %c0_i32_1 = arith.constant 0 : i32
    return %c0_i32, %c0_i32_0 : i32, i32
  }
  func.func @transform_7(%arg0: i32) -> (i32, i32) {
    %c0_i32 = arith.constant 0 : i32
    %c0_i32_0 = arith.constant 0 : i32
    %c0_i32_1 = arith.constant 0 : i32
    return %c0_i32, %c0_i32_0 : i32, i32
  }
  func.func @transform_8(%arg0: i32) -> (i32, i32) {
    %c0_i32 = arith.constant 0 : i32
    %c0_i32_0 = arith.constant 0 : i32
    %c0_i32_1 = arith.constant 0 : i32
    return %c0_i32, %c0_i32_0 : i32, i32
  }
  func.func @transform_9(%arg0: i32) -> (i32, i32) {
    %c0_i32 = arith.constant 0 : i32
    %c0_i32_0 = arith.constant 0 : i32
    return %arg0, %c0_i32 : i32, i32
  }
}

</mosaic_0001>

<llo_original>
// kernel: _forward.1
$region0: #{_forward.1}
  #allocation0 [shape = 'u32[]', space=smem, size = 0x4, offset = 0x4, fixed_abs, tag = 'smem constant byte address 0x4 - core index']
  #allocation1 [shape = 'u32[144,128]{1,0:T(1,128)}', space=vmem, size = 0x12000, scoped, tag = 'internal scratch']
  %s0 = inlined_call_operand.vmem [shape: f32[16,128], index: 0, kind: input, shape index: {}]
  %s1 = inlined_call_operand.hbm [shape: f32[128,128], index: 1, kind: input, shape index: {}]
  %s2 = inlined_call_operand.vmem [shape: f32[1,128], index: 2, kind: input, shape index: {}]
  %s3 = inlined_call_operand.hbm [shape: f32[128,128], index: 3, kind: input, shape index: {}]
  %s4 = inlined_call_operand.vmem [shape: f32[1,128], index: 4, kind: input, shape index: {}]
  %s5 = inlined_call_operand.hbm [shape: f32[128,128], index: 5, kind: input, shape index: {}]
  %s6 = inlined_call_operand.vmem [shape: f32[1,128], index: 6, kind: input, shape index: {}]
  %s7 = inlined_call_operand.hbm [shape: f32[128,128], index: 7, kind: input, shape index: {}]
  %s8 = inlined_call_operand.vmem [shape: f32[1,128], index: 8, kind: input, shape index: {}]
  %s9 = inlined_call_operand.vmem [shape: f32[16,128], index: 9, kind: output, shape index: {}]
  %s10 = sld [smem:[#allocation0]]
  $region85: #{_forward.1} parent=0
    _
  %s12 = ssub.s32 1, %s10
  %s13 = scalar_select 0, %s12, %s10
  $region1: #{_forward.1} parent=0
    #allocation2 [shape = 'u8[65536]{0}', space=vmem, size = 0x10000, scoped, tag = 'input window, operand 1, single buffered']
    #allocation3 [shape = 's32[2]{0}', space=sflag, size = 0x8, scoped, tag = 'scoped memory for _forward.1']
    #allocation4 [shape = 'u8[65536]{0}', space=vmem, size = 0x10000, scoped, tag = 'input window, operand 3, single buffered']
    #allocation5 [shape = 's32[1]{0}', space=sflag, size = 0x4, scoped, tag = 'scoped memory for _forward.1']
    #allocation6 [shape = 'u8[65536]{0}', space=vmem, size = 0x10000, scoped, tag = 'input window, operand 5, single buffered']
    #allocation7 [shape = 'u8[65536]{0}', space=vmem, size = 0x10000, scoped, tag = 'input window, operand 7, single buffered']
    #allocation8 [shape = 's32[1]{0}', space=sflag, size = 0x4, scoped, tag = 'scoped memory for _forward.1']
    %14 = vsyncpa [#allocation3], 0
    %15 = vsyncpa [#allocation5], 0
    %16 = vsyncpa [#allocation8], 0
    loop: start=0, step=1, limit=4
    $region2: #{_forward.1} parent=1 // loop_pre_header
      _
    $region3: #{_forward.1} parent=1 // loop_header
      %s18 = sphi 0, %s22
      %p19 = scmp.ge.s32.totalorder %s18, 4
      %s28 = sphi 0, %s30
      %s31 = sphi 0, %s28
      %s32 = sphi 0, %s31
      %s48 = sphi 0, %s32
      %s52 = sphi 0, %s52
      %s54 = sphi 0, %s52
      %s55 = sphi 0, %s54
      %s69 = sphi 0, %s55
      %s73 = sphi 0, %s73
      %s75 = sphi 0, %s73
      %s76 = sphi 0, %s75
      %s90 = sphi 0, %s76
      %s94 = sphi 0, %s94
      %s96 = sphi 0, %s94
      %s97 = sphi 0, %s96
      %s111 = sphi 0, %s97
      %s115 = sphi 0, %s115
      %s117 = sphi 0, %s115
      %s118 = sphi 0, %s117
      %s132 = sphi 0, %s118
      %s136 = sphi 0, %s136
      %s138 = sphi 0, %s136
      %s139 = sphi 0, %s138
      %s153 = sphi 0, %s139
      %s157 = sphi 0, %s157
      %s159 = sphi 0, %s157
      %s160 = sphi 0, %s159
      %s174 = sphi 0, %s160
      %s178 = sphi 0, %s178
      %s180 = sphi 0, %s178
      %s181 = sphi 0, %s180
      %s195 = sphi 0, %s181
      %s199 = sphi 0, %s199
      %s201 = sphi 0, %s199
      %s202 = sphi 0, %s201
      %s216 = sphi 0, %s202
      %s222 = sphi 0, %s224
      %s225 = sphi 0, %s222
      %s226 = sphi 0, %s225
      %s242 = sphi 0, %s226
    $region4: #{_forward.1} parent=1 // loop_header_branch
      %21 = sbr.rel (%p19) target = $region8
    $region5: #{_forward.1} parent=1 // loop_body
      %s23 = ssub.s32 %s18, 1
      %s24 = ssub.s32 %s18, 2
      %s25 = sadd.s32 %s18, 1
      %s26 = ssub.s32 %s18, %s25
      %p27 = scmp.eq.s32.totalorder %s26, 0
      %s29 = sadd.s32 %s28, 1
      %s30 = scalar_select %p27, %s28, %s29
      %p33 = pneg %p27
      %p34 = scmp.eq.s32.totalorder %s18, 1
      %p35 = por %p33, %p34
      %p36 = scmp.ne.s32.totalorder %s28, %s31
      %p37 = scmp.eq.s32.totalorder %s18, 0
      %p38 = por %p36, %p37
      %p39 = scmp.ne.s32.totalorder %s28, %s31
      %p40 = scmp.eq.s32.totalorder %s23, 1
      %p41 = por %p39, %p40
      %p42 = scmp.ne.s32.totalorder %s31, %s32
      %p43 = scmp.eq.s32.totalorder %s23, 0
      %p44 = por %p42, %p43
      %p45 = scmp.ne.s32.totalorder %s31, %s32
      %p46 = scmp.eq.s32.totalorder %s24, 1
      %p47 = por %p45, %p46
      %p49 = scmp.ne.s32.totalorder %s32, %s48
      %p50 = scmp.eq.s32.totalorder %s24, 0
      %p51 = por %p49, %p50
      %s53 = sadd.s32 %s52, 1
      %p56 = scmp.eq.s32.totalorder %s18, 1
      %p57 = scmp.ne.s32.totalorder %s52, %s54
      %p58 = scmp.eq.s32.totalorder %s18, 0
      %p59 = por %p57, %p58
      %p60 = scmp.ne.s32.totalorder %s52, %s54
      %p61 = scmp.eq.s32.totalorder %s23, 1
      %p62 = por %p60, %p61
      %p63 = scmp.ne.s32.totalorder %s54, %s55
      %p64 = scmp.eq.s32.totalorder %s23, 0
      %p65 = por %p63, %p64
      %p66 = scmp.ne.s32.totalorder %s54, %s55
      %p67 = scmp.eq.s32.totalorder %s24, 1
      %p68 = por %p66, %p67
      %p70 = scmp.ne.s32.totalorder %s55, %s69
      %p71 = scmp.eq.s32.totalorder %s24, 0
      %p72 = por %p70, %p71
      %s74 = sadd.s32 %s73, 1
      %p77 = scmp.eq.s32.totalorder %s18, 1
      %p78 = scmp.ne.s32.totalorder %s73, %s75
      %p79 = scmp.eq.s32.totalorder %s18, 0
      %p80 = por %p78, %p79
      %p81 = scmp.ne.s32.totalorder %s73, %s75
      %p82 = scmp.eq.s32.totalorder %s23, 1
      %p83 = por %p81, %p82
      %p84 = scmp.ne.s32.totalorder %s75, %s76
      %p85 = scmp.eq.s32.totalorder %s23, 0
      %p86 = por %p84, %p85
      %p87 = scmp.ne.s32.totalorder %s75, %s76
      %p88 = scmp.eq.s32.totalorder %s24, 1
      %p89 = por %p87, %p88
      %p91 = scmp.ne.s32.totalorder %s76, %s90
      %p92 = scmp.eq.s32.totalorder %s24, 0
      %p93 = por %p91, %p92
      %s95 = sadd.s32 %s94, 1
      %p98 = scmp.eq.s32.totalorder %s18, 1
      %p99 = scmp.ne.s32.totalorder %s94, %s96
      %p100 = scmp.eq.s32.totalorder %s18, 0
      %p101 = por %p99, %p100
      %p102 = scmp.ne.s32.totalorder %s94, %s96
      %p103 = scmp.eq.s32.totalorder %s23, 1
      %p104 = por %p102, %p103
      %p105 = scmp.ne.s32.totalorder %s96, %s97
      %p106 = scmp.eq.s32.totalorder %s23, 0
      %p107 = por %p105, %p106
      %p108 = scmp.ne.s32.totalorder %s96, %s97
      %p109 = scmp.eq.s32.totalorder %s24, 1
      %p110 = por %p108, %p109
      %p112 = scmp.ne.s32.totalorder %s97, %s111
      %p113 = scmp.eq.s32.totalorder %s24, 0
      %p114 = por %p112, %p113
      %s116 = sadd.s32 %s115, 1
      %p119 = scmp.eq.s32.totalorder %s18, 1
      %p120 = scmp.ne.s32.totalorder %s115, %s117
      %p121 = scmp.eq.s32.totalorder %s18, 0
      %p122 = por %p120, %p121
      %p123 = scmp.ne.s32.totalorder %s115, %s117
      %p124 = scmp.eq.s32.totalorder %s23, 1
      %p125 = por %p123, %p124
      %p126 = scmp.ne.s32.totalorder %s117, %s118
      %p127 = scmp.eq.s32.totalorder %s23, 0
      %p128 = por %p126, %p127
      %p129 = scmp.ne.s32.totalorder %s117, %s118
      %p130 = scmp.eq.s32.totalorder %s24, 1
      %p131 = por %p129, %p130
      %p133 = scmp.ne.s32.totalorder %s118, %s132
      %p134 = scmp.eq.s32.totalorder %s24, 0
      %p135 = por %p133, %p134
      %s137 = sadd.s32 %s136, 1
      %p140 = scmp.eq.s32.totalorder %s18, 1
      %p141 = scmp.ne.s32.totalorder %s136, %s138
      %p142 = scmp.eq.s32.totalorder %s18, 0
      %p143 = por %p141, %p142
      %p144 = scmp.ne.s32.totalorder %s136, %s138
      %p145 = scmp.eq.s32.totalorder %s23, 1
      %p146 = por %p144, %p145
      %p147 = scmp.ne.s32.totalorder %s138, %s139
      %p148 = scmp.eq.s32.totalorder %s23, 0
      %p149 = por %p147, %p148
      %p150 = scmp.ne.s32.totalorder %s138, %s139
      %p151 = scmp.eq.s32.totalorder %s24, 1
      %p152 = por %p150, %p151
      %p154 = scmp.ne.s32.totalorder %s139, %s153
      %p155 = scmp.eq.s32.totalorder %s24, 0
      %p156 = por %p154, %p155
      %s158 = sadd.s32 %s157, 1
      %p161 = scmp.eq.s32.totalorder %s18, 1
      %p162 = scmp.ne.s32.totalorder %s157, %s159
      %p163 = scmp.eq.s32.totalorder %s18, 0
      %p164 = por %p162, %p163
      %p165 = scmp.ne.s32.totalorder %s157, %s159
      %p166 = scmp.eq.s32.totalorder %s23, 1
      %p167 = por %p165, %p166
      %p168 = scmp.ne.s32.totalorder %s159, %s160
      %p169 = scmp.eq.s32.totalorder %s23, 0
      %p170 = por %p168, %p169
      %p171 = scmp.ne.s32.totalorder %s159, %s160
      %p172 = scmp.eq.s32.totalorder %s24, 1
      %p173 = por %p171, %p172
      %p175 = scmp.ne.s32.totalorder %s160, %s174
      %p176 = scmp.eq.s32.totalorder %s24, 0
      %p177 = por %p175, %p176
      %s179 = sadd.s32 %s178, 1
      %p182 = scmp.eq.s32.totalorder %s18, 1
      %p183 = scmp.ne.s32.totalorder %s178, %s180
      %p184 = scmp.eq.s32.totalorder %s18, 0
      %p185 = por %p183, %p184
      %p186 = scmp.ne.s32.totalorder %s178, %s180
      %p187 = scmp.eq.s32.totalorder %s23, 1
      %p188 = por %p186, %p187
      %p189 = scmp.ne.s32.totalorder %s180, %s181
      %p190 = scmp.eq.s32.totalorder %s23, 0
      %p191 = por %p189, %p190
      %p192 = scmp.ne.s32.totalorder %s180, %s181
      %p193 = scmp.eq.s32.totalorder %s24, 1
      %p194 = por %p192, %p193
      %p196 = scmp.ne.s32.totalorder %s181, %s195
      %p197 = scmp.eq.s32.totalorder %s24, 0
      %p198 = por %p196, %p197
      %s200 = sadd.s32 %s199, 1
      %p203 = scmp.eq.s32.totalorder %s18, 1
      %p204 = scmp.ne.s32.totalorder %s199, %s201
      %p205 = scmp.eq.s32.totalorder %s18, 0
      %p206 = por %p204, %p205
      %p207 = scmp.ne.s32.totalorder %s199, %s201
      %p208 = scmp.eq.s32.totalorder %s23, 1
      %p209 = por %p207, %p208
      %p210 = scmp.ne.s32.totalorder %s201, %s202
      %p211 = scmp.eq.s32.totalorder %s23, 0
      %p212 = por %p210, %p211
      %p213 = scmp.ne.s32.totalorder %s201, %s202
      %p214 = scmp.eq.s32.totalorder %s24, 1
      %p215 = por %p213, %p214
      %p217 = scmp.ne.s32.totalorder %s202, %s216
      %p218 = scmp.eq.s32.totalorder %s24, 0
      %p219 = por %p217, %p218
      %s220 = ssub.s32 %s18, %s25
      %p221 = scmp.eq.s32.totalorder %s220, 0
      %s223 = sadd.s32 %s222, 1
      %s224 = scalar_select %p221, %s222, %s223
      %p227 = pneg %p221
      %p228 = scmp.eq.s32.totalorder %s18, 1
      %p229 = por %p227, %p228
      %p230 = scmp.ne.s32.totalorder %s222, %s225
      %p231 = scmp.eq.s32.totalorder %s18, 0
      %p232 = por %p230, %p231
      %p233 = scmp.ne.s32.totalorder %s222, %s225
      %p234 = scmp.eq.s32.totalorder %s23, 1
      %p235 = por %p233, %p234
      %p236 = scmp.ne.s32.totalorder %s225, %s226
      %p237 = scmp.eq.s32.totalorder %s23, 0
      %p238 = por %p236, %p237
      %p239 = scmp.ne.s32.totalorder %s225, %s226
      %p240 = scmp.eq.s32.totalorder %s24, 1
      %p241 = por %p239, %p240
      %p243 = scmp.ne.s32.totalorder %s226, %s242
      %p244 = scmp.eq.s32.totalorder %s24, 0
      %p245 = por %p243, %p244
      %p246 = scmp.le.s32.totalorder 1, %s18
      %p247 = scmp.lt.s32.totalorder %s18, 3
      %p248 = pnand %p246, %p247
      %p249 = pneg %p248
      // Predicated region
      $region9: #{_forward.1} parent=5 // pred_check
        _
      $region10: #{_forward.1} parent=5 // pred_check_branch
        %251 = sbr.rel (%p248) target = $region12
      $region11: #{_forward.1} parent=5 // pred_region
        %s252 = ssub.s32 %s18, 1
        // Predicated region
        $region13: #{_forward.1} parent=11 // pred_check
          %p253 = pneg %p65
        $region14: #{_forward.1} parent=11 // pred_check_branch
          %255 = sbr.rel (%p253) target = $region16
        $region15: #{_forward.1} parent=11 // pred_region
          %s257 = ssub.s32 2048, 2048
          %258 = vsyncadd [#allocation3], %s257
          %s259 = sshll.u32 [#allocation2], 4
          %s260 = int_to_ptr.vmem [resolvable:$true] %s259
          %265 = dma.hbm_to_vmem [thread:$0]  %s1, 2048, %s260, [#allocation3], 128, 128, 8
        $region16: #{_forward.1} parent=11 // pred_fallthru
          _
        // Predicated region
        $region17: #{_forward.1} parent=11 // pred_check
          %p266 = pneg %p86
        $region18: #{_forward.1} parent=11 // pred_check_branch
          %268 = sbr.rel (%p266) target = $region20
        $region19: #{_forward.1} parent=11 // pred_region
          _
        $region20: #{_forward.1} parent=11 // pred_fallthru
          _
        // Predicated region
        $region21: #{_forward.1} parent=11 // pred_check
          %p269 = pneg %p107
        $region22: #{_forward.1} parent=11 // pred_check_branch
          %271 = sbr.rel (%p269) target = $region24
        $region23: #{_forward.1} parent=11 // pred_region
          %s273 = ssub.s32 2048, 2048
          %274 = vsyncadd [#allocation5], %s273
          %s275 = sshll.u32 [#allocation4], 4
          %s276 = int_to_ptr.vmem [resolvable:$true] %s275
          %281 = dma.hbm_to_vmem [thread:$0]  %s3, 2048, %s276, [#allocation5], 128, 128, 8
        $region24: #{_forward.1} parent=11 // pred_fallthru
          _
        // Predicated region
        $region25: #{_forward.1} parent=11 // pred_check
          %p282 = pneg %p128
        $region26: #{_forward.1} parent=11 // pred_check_branch
          %284 = sbr.rel (%p282) target = $region28
        $region27: #{_forward.1} parent=11 // pred_region
          _
        $region28: #{_forward.1} parent=11 // pred_fallthru
          _
        // Predicated region
        $region29: #{_forward.1} parent=11 // pred_check
          %p285 = pneg %p149
        $region30: #{_forward.1} parent=11 // pred_check_branch
          %287 = sbr.rel (%p285) target = $region32
        $region31: #{_forward.1} parent=11 // pred_region
          %s289 = ssub.s32 2048, 2048
          %290 = vsyncadd [#allocation5], %s289
          %s291 = sshll.u32 [#allocation6], 4
          %s292 = int_to_ptr.vmem [resolvable:$true] %s291
          %297 = dma.hbm_to_vmem [thread:$0]  %s5, 2048, %s292, [#allocation5], 128, 128, 8
        $region32: #{_forward.1} parent=11 // pred_fallthru
          _
        // Predicated region
        $region33: #{_forward.1} parent=11 // pred_check
          %p298 = pneg %p170
        $region34: #{_forward.1} parent=11 // pred_check_branch
          %300 = sbr.rel (%p298) target = $region36
        $region35: #{_forward.1} parent=11 // pred_region
          _
        $region36: #{_forward.1} parent=11 // pred_fallthru
          _
        // Predicated region
        $region37: #{_forward.1} parent=11 // pred_check
          %p301 = pneg %p191
        $region38: #{_forward.1} parent=11 // pred_check_branch
          %303 = sbr.rel (%p301) target = $region40
        $region39: #{_forward.1} parent=11 // pred_region
          %s305 = ssub.s32 2048, 2048
          %306 = vsyncadd [#allocation8], %s305
          %s307 = sshll.u32 [#allocation7], 4
          %s308 = int_to_ptr.vmem [resolvable:$true] %s307
          %313 = dma.hbm_to_vmem [thread:$0]  %s7, 2048, %s308, [#allocation8], 128, 128, 8
        $region40: #{_forward.1} parent=11 // pred_fallthru
          _
        // Predicated region
        $region41: #{_forward.1} parent=11 // pred_check
          %p314 = pneg %p212
        $region42: #{_forward.1} parent=11 // pred_check_branch
          %316 = sbr.rel (%p314) target = $region44
        $region43: #{_forward.1} parent=11 // pred_region
          _
        $region44: #{_forward.1} parent=11 // pred_fallthru
          _
      $region12: #{_forward.1} parent=5 // pred_fallthru
        _
      %p317 = scmp.lt.s32.totalorder %s18, 2
      // Predicated region
      $region45: #{_forward.1} parent=5 // pred_check
        %p318 = pneg %p317
      $region46: #{_forward.1} parent=5 // pred_check_branch
        %320 = sbr.rel (%p318) target = $region48
      $region47: #{_forward.1} parent=5 // pred_region
        // Predicated region
        $region49: #{_forward.1} parent=47 // pred_check
          %p321 = pneg %p38
        $region50: #{_forward.1} parent=47 // pred_check_branch
          %323 = sbr.rel (%p321) target = $region52
        $region51: #{_forward.1} parent=47 // pred_region
          %p324 = scmp.lt.s32.totalorder %s18, 1
          %s325 = scalar_select %p324, %s18, 1
          %s326 = smul.addr %s325, 8
          %s327 = scalar_lea.vmem %s0, %s326
        $region52: #{_forward.1} parent=47 // pred_fallthru
          _
      $region48: #{_forward.1} parent=5 // pred_fallthru
        _
      %p328 = scmp.le.s32.totalorder 1, %s18
      %p329 = scmp.lt.s32.totalorder %s18, 3
      %p330 = pnand %p328, %p329
      %p331 = pneg %p330
      // Predicated region
      $region53: #{_forward.1} parent=5 // pred_check
        _
      $region54: #{_forward.1} parent=5 // pred_check_branch
        %333 = sbr.rel (%p330) target = $region56
      $region55: #{_forward.1} parent=5 // pred_region
        %s334 = ssub.s32 %s18, 1
        // Predicated region
        $region57: #{_forward.1} parent=55 // pred_check
          %p335 = pneg %p65
        $region58: #{_forward.1} parent=55 // pred_check_branch
          %337 = sbr.rel (%p335) target = $region60
        $region59: #{_forward.1} parent=55 // pred_region
          %338 = dma.done [#allocation3], 2048
        $region60: #{_forward.1} parent=55 // pred_fallthru
          _
        // Predicated region
        $region61: #{_forward.1} parent=55 // pred_check
          %p339 = pneg %p107
        $region62: #{_forward.1} parent=55 // pred_check_branch
          %341 = sbr.rel (%p339) target = $region64
        $region63: #{_forward.1} parent=55 // pred_region
          %342 = dma.done [#allocation5], 2048
        $region64: #{_forward.1} parent=55 // pred_fallthru
          _
        // Predicated region
        $region65: #{_forward.1} parent=55 // pred_check
          %p343 = pneg %p149
        $region66: #{_forward.1} parent=55 // pred_check_branch
          %345 = sbr.rel (%p343) target = $region68
        $region67: #{_forward.1} parent=55 // pred_region
          %346 = dma.done [#allocation5], 2048
        $region68: #{_forward.1} parent=55 // pred_fallthru
          _
        // Predicated region
        $region69: #{_forward.1} parent=55 // pred_check
          %p347 = pneg %p191
        $region70: #{_forward.1} parent=55 // pred_check_branch
          %349 = sbr.rel (%p347) target = $region72
        $region71: #{_forward.1} parent=55 // pred_region
          %350 = dma.done [#allocation8], 2048
        $region72: #{_forward.1} parent=55 // pred_fallthru
          _
        %p351 = scmp.lt.s32.totalorder %s23, 1
        %s352 = scalar_select %p351, %s23, 1
        %s353 = smul.addr %s352, 8
        %s354 = scalar_lea.vmem %s0, %s353
        %p355 = pneg %p44
        %p356 = pneg %p41
        %p357 = pneg %p65
        %p358 = pneg %p62
        %p359 = pneg %p86
        %p360 = pneg %p83
        %p361 = pneg %p107
        %p362 = pneg %p104
        %p363 = pneg %p128
        %p364 = pneg %p125
        %p365 = pneg %p149
        %p366 = pneg %p146
        %p367 = pneg %p170
        %p368 = pneg %p167
        %p369 = pneg %p191
        %p370 = pneg %p188
        %p371 = pneg %p212
        %p372 = pneg %p209
        %p373 = pneg %p238
        %p374 = pneg %p235
        %p375 = scmp.lt.s32.totalorder %s23, 1
        %s376 = scalar_select %p375, %s23, 1
        %s377 = smul.addr %s376, 8
        %s378 = scalar_lea.vmem %s9, %s377
        %p379 = scmp.lt.s32.totalorder %s23, 1
        %s380 = scalar_select %p379, %s23, 1
        %s381 = smul.addr %s380, 8
        %s382 = scalar_lea.vmem %s0, %s381
        %p383 = scmp.lt.s32.totalorder %s23, 1
        %s384 = scalar_select %p383, %s23, 1
        %s385 = smul.addr %s384, 8
        %s386 = scalar_lea.vmem %s9, %s385
        %v387 = vld [vmem:[%s382] sm:$0xff]
        %v388 = vld [vmem:[#allocation2] sm:$0xff]
        %v389 = vld [vmem:[#allocation2 + $0x8] sm:$0xff]
        %v390 = vld [vmem:[#allocation2 + $0x10] sm:$0xff]
        %v391 = vld [vmem:[#allocation2 + $0x18] sm:$0xff]
        %v392 = vld [vmem:[#allocation2 + $0x20] sm:$0xff]
        %v393 = vld [vmem:[#allocation2 + $0x28] sm:$0xff]
        %v394 = vld [vmem:[#allocation2 + $0x30] sm:$0xff]
        %v395 = vld [vmem:[#allocation2 + $0x38] sm:$0xff]
        %v396 = vld [vmem:[#allocation2 + $0x40] sm:$0xff]
        %v397 = vld [vmem:[#allocation2 + $0x48] sm:$0xff]
        %v398 = vld [vmem:[#allocation2 + $0x50] sm:$0xff]
        %v399 = vld [vmem:[#allocation2 + $0x58] sm:$0xff]
        %v400 = vld [vmem:[#allocation2 + $0x60] sm:$0xff]
        %v401 = vld [vmem:[#allocation2 + $0x68] sm:$0xff]
        %v402 = vld [vmem:[#allocation2 + $0x70] sm:$0xff]
        %v403 = vld [vmem:[#allocation2 + $0x78] sm:$0xff]
        %v404 = vld [vmem:[%s2] sm:$0x1]
        %v406 = vlaneseq
        %v407 = vshrl.u32 %v406, 7
        %v408 = vsub.s32 0, %v407
        %v409 = vrot.slane %v404, %v408
        %411 = vmatprep.subr.mxu0 0.0
        %412 = vmatpush1.msra.mxu0 %v403
        %413 = vmatprep.subr.mxu0 0.0
        %414 = vmatpush1.msra.mxu0 %v402
        %415 = vmatprep.subr.mxu0 0.0
        %416 = vmatpush1.msra.mxu0 %v401
        %417 = vmatprep.subr.mxu0 0.0
        %418 = vmatpush1.msra.mxu0 %v400
        %419 = vmatprep.subr.mxu0 0.0
        %420 = vmatpush1.msra.mxu0 %v399
        %421 = vmatprep.subr.mxu0 0.0
        %422 = vmatpush1.msra.mxu0 %v398
        %423 = vmatprep.subr.mxu0 0.0
        %424 = vmatpush1.msra.mxu0 %v397
        %425 = vmatprep.subr.mxu0 0.0
        %426 = vmatpush1.msra.mxu0 %v396
        %427 = vmatprep.subr.mxu0 0.0
        %428 = vmatpush1.msra.mxu0 %v395
        %429 = vmatprep.subr.mxu0 0.0
        %430 = vmatpush1.msra.mxu0 %v394
        %431 = vmatprep.subr.mxu0 0.0
        %432 = vmatpush1.msra.mxu0 %v393
        %433 = vmatprep.subr.mxu0 0.0
        %434 = vmatpush1.msra.mxu0 %v392
        %435 = vmatprep.subr.mxu0 0.0
        %436 = vmatpush1.msra.mxu0 %v391
        %437 = vmatprep.subr.mxu0 0.0
        %438 = vmatpush1.msra.mxu0 %v390
        %439 = vmatprep.subr.mxu0 0.0
        %440 = vmatpush1.msra.mxu0 %v389
        %441 = vmatprep.subr.mxu0 0.0
        %442 = vmatpush1.msra.mxu0 %v388
        %443 = vmatprep.subr.mxu0 0.0
        %444 = vmatpush2.msra.mxu0 0.0
        %445 = vmatprep.subr.mxu0 0.0
        %446 = vmatpush2.msra.mxu0 0.0
        %447 = vmatprep.subr.mxu0 0.0
        %448 = vmatpush2.msra.mxu0 0.0
        %449 = vmatprep.subr.mxu0 0.0
        %450 = vmatpush2.msra.mxu0 0.0
        %451 = vmatprep.subr.mxu0 0.0
        %452 = vmatpush2.msra.mxu0 0.0
        %453 = vmatprep.subr.mxu0 0.0
        %454 = vmatpush2.msra.mxu0 0.0
        %455 = vmatprep.subr.mxu0 0.0
        %456 = vmatpush2.msra.mxu0 0.0
        %457 = vmatprep.subr.mxu0 0.0
        %458 = vmatpush2.msra.mxu0 0.0
        %459 = vmatprep.subr.mxu0 0.0
        %460 = vmatpush2.msra.mxu0 0.0
        %461 = vmatprep.subr.mxu0 0.0
        %462 = vmatpush2.msra.mxu0 0.0
        %463 = vmatprep.subr.mxu0 0.0
        %464 = vmatpush2.msra.mxu0 0.0
        %465 = vmatprep.subr.mxu0 0.0
        %466 = vmatpush2.msra.mxu0 0.0
        %467 = vmatprep.subr.mxu0 0.0
        %468 = vmatpush2.msra.mxu0 0.0
        %469 = vmatprep.subr.mxu0 0.0
        %470 = vmatpush2.msra.mxu0 0.0
        %471 = vmatprep.subr.mxu0 0.0
        %472 = vmatpush2.msra.mxu0 0.0
        %473 = vmatprep.subr.mxu0 0.0
        %474 = vmatpush2.msra.mxu0 0.0
        %475 = vmatprep.mubr.f32.mxu0 0.0
        %476 = vmatmul.mubr.f32.gmra.mxu0 %v387
        %v477 = vpop.f32.mrf.mxu0
        %v478 = vadd.f32 %v409, %v477
        %v479 = vpop.f32.mrf.mxu0
        %480 = vdwg.mxu0
        %v481 = vmax.f32 %v478, 0.0
        %v482 = vld [vmem:[#allocation4] sm:$0xff]
        %v483 = vld [vmem:[#allocation4 + $0x8] sm:$0xff]
        %v484 = vld [vmem:[#allocation4 + $0x10] sm:$0xff]
        %v485 = vld [vmem:[#allocation4 + $0x18] sm:$0xff]
        %v486 = vld [vmem:[#allocation4 + $0x20] sm:$0xff]
        %v487 = vld [vmem:[#allocation4 + $0x28] sm:$0xff]
        %v488 = vld [vmem:[#allocation4 + $0x30] sm:$0xff]
        %v489 = vld [vmem:[#allocation4 + $0x38] sm:$0xff]
        %v490 = vld [vmem:[#allocation4 + $0x40] sm:$0xff]
        %v491 = vld [vmem:[#allocation4 + $0x48] sm:$0xff]
        %v492 = vld [vmem:[#allocation4 + $0x50] sm:$0xff]
        %v493 = vld [vmem:[#allocation4 + $0x58] sm:$0xff]
        %v494 = vld [vmem:[#allocation4 + $0x60] sm:$0xff]
        %v495 = vld [vmem:[#allocation4 + $0x68] sm:$0xff]
        %v496 = vld [vmem:[#allocation4 + $0x70] sm:$0xff]
        %v497 = vld [vmem:[#allocation4 + $0x78] sm:$0xff]
        %v498 = vld [vmem:[%s4] sm:$0x1]
        %v500 = vlaneseq
        %v501 = vshrl.u32 %v500, 7
        %v502 = vsub.s32 0, %v501
        %v503 = vrot.slane %v498, %v502
        %505 = vmatprep.subr.mxu0 0.0
        %506 = vmatpush1.msra.mxu0 %v497
        %507 = vmatprep.subr.mxu0 0.0
        %508 = vmatpush1.msra.mxu0 %v496
        %509 = vmatprep.subr.mxu0 0.0
        %510 = vmatpush1.msra.mxu0 %v495
        %511 = vmatprep.subr.mxu0 0.0
        %512 = vmatpush1.msra.mxu0 %v494
        %513 = vmatprep.subr.mxu0 0.0
        %514 = vmatpush1.msra.mxu0 %v493
        %515 = vmatprep.subr.mxu0 0.0
        %516 = vmatpush1.msra.mxu0 %v492
        %517 = vmatprep.subr.mxu0 0.0
        %518 = vmatpush1.msra.mxu0 %v491
        %519 = vmatprep.subr.mxu0 0.0
        %520 = vmatpush1.msra.mxu0 %v490
        %521 = vmatprep.subr.mxu0 0.0
        %522 = vmatpush1.msra.mxu0 %v489
        %523 = vmatprep.subr.mxu0 0.0
        %524 = vmatpush1.msra.mxu0 %v488
        %525 = vmatprep.subr.mxu0 0.0
        %526 = vmatpush1.msra.mxu0 %v487
        %527 = vmatprep.subr.mxu0 0.0
        %528 = vmatpush1.msra.mxu0 %v486
        %529 = vmatprep.subr.mxu0 0.0
        %530 = vmatpush1.msra.mxu0 %v485
        %531 = vmatprep.subr.mxu0 0.0
        %532 = vmatpush1.msra.mxu0 %v484
        %533 = vmatprep.subr.mxu0 0.0
        %534 = vmatpush1.msra.mxu0 %v483
        %535 = vmatprep.subr.mxu0 0.0
        %536 = vmatpush1.msra.mxu0 %v482
        %537 = vmatprep.subr.mxu0 0.0
        %538 = vmatpush2.msra.mxu0 0.0
        %539 = vmatprep.subr.mxu0 0.0
        %540 = vmatpush2.msra.mxu0 0.0
        %541 = vmatprep.subr.mxu0 0.0
        %542 = vmatpush2.msra.mxu0 0.0
        %543 = vmatprep.subr.mxu0 0.0
        %544 = vmatpush2.msra.mxu0 0.0
        %545 = vmatprep.subr.mxu0 0.0
        %546 = vmatpush2.msra.mxu0 0.0
        %547 = vmatprep.subr.mxu0 0.0
        %548 = vmatpush2.msra.mxu0 0.0
        %549 = vmatprep.subr.mxu0 0.0
        %550 = vmatpush2.msra.mxu0 0.0
        %551 = vmatprep.subr.mxu0 0.0
        %552 = vmatpush2.msra.mxu0 0.0
        %553 = vmatprep.subr.mxu0 0.0
        %554 = vmatpush2.msra.mxu0 0.0
        %555 = vmatprep.subr.mxu0 0.0
        %556 = vmatpush2.msra.mxu0 0.0
        %557 = vmatprep.subr.mxu0 0.0
        %558 = vmatpush2.msra.mxu0 0.0
        %559 = vmatprep.subr.mxu0 0.0
        %560 = vmatpush2.msra.mxu0 0.0
        %561 = vmatprep.subr.mxu0 0.0
        %562 = vmatpush2.msra.mxu0 0.0
        %563 = vmatprep.subr.mxu0 0.0
        %564 = vmatpush2.msra.mxu0 0.0
        %565 = vmatprep.subr.mxu0 0.0
        %566 = vmatpush2.msra.mxu0 0.0
        %567 = vmatprep.subr.mxu0 0.0
        %568 = vmatpush2.msra.mxu0 0.0
        %569 = vmatprep.mubr.f32.mxu0 0.0
        %570 = vmatmul.mubr.f32.gmra.mxu0 %v481
        %v571 = vpop.f32.mrf.mxu0
        %v572 = vadd.f32 %v503, %v571
        %v573 = vpop.f32.mrf.mxu0
        %574 = vdwg.mxu0
        %v575 = vmax.f32 %v572, 0.0
        %v576 = vld [vmem:[#allocation6] sm:$0xff]
        %v577 = vld [vmem:[#allocation6 + $0x8] sm:$0xff]
        %v578 = vld [vmem:[#allocation6 + $0x10] sm:$0xff]
        %v579 = vld [vmem:[#allocation6 + $0x18] sm:$0xff]
        %v580 = vld [vmem:[#allocation6 + $0x20] sm:$0xff]
        %v581 = vld [vmem:[#allocation6 + $0x28] sm:$0xff]
        %v582 = vld [vmem:[#allocation6 + $0x30] sm:$0xff]
        %v583 = vld [vmem:[#allocation6 + $0x38] sm:$0xff]
        %v584 = vld [vmem:[#allocation6 + $0x40] sm:$0xff]
        %v585 = vld [vmem:[#allocation6 + $0x48] sm:$0xff]
        %v586 = vld [vmem:[#allocation6 + $0x50] sm:$0xff]
        %v587 = vld [vmem:[#allocation6 + $0x58] sm:$0xff]
        %v588 = vld [vmem:[#allocation6 + $0x60] sm:$0xff]
        %v589 = vld [vmem:[#allocation6 + $0x68] sm:$0xff]
        %v590 = vld [vmem:[#allocation6 + $0x70] sm:$0xff]
        %v591 = vld [vmem:[#allocation6 + $0x78] sm:$0xff]
        %v592 = vld [vmem:[%s6] sm:$0x1]
        %v594 = vlaneseq
        %v595 = vshrl.u32 %v594, 7
        %v596 = vsub.s32 0, %v595
        %v597 = vrot.slane %v592, %v596
        %599 = vmatprep.subr.mxu0 0.0
        %600 = vmatpush1.msra.mxu0 %v591
        %601 = vmatprep.subr.mxu0 0.0
        %602 = vmatpush1.msra.mxu0 %v590
        %603 = vmatprep.subr.mxu0 0.0
        %604 = vmatpush1.msra.mxu0 %v589
        %605 = vmatprep.subr.mxu0 0.0
        %606 = vmatpush1.msra.mxu0 %v588
        %607 = vmatprep.subr.mxu0 0.0
        %608 = vmatpush1.msra.mxu0 %v587
        %609 = vmatprep.subr.mxu0 0.0
        %610 = vmatpush1.msra.mxu0 %v586
        %611 = vmatprep.subr.mxu0 0.0
        %612 = vmatpush1.msra.mxu0 %v585
        %613 = vmatprep.subr.mxu0 0.0
        %614 = vmatpush1.msra.mxu0 %v584
        %615 = vmatprep.subr.mxu0 0.0
        %616 = vmatpush1.msra.mxu0 %v583
        %617 = vmatprep.subr.mxu0 0.0
        %618 = vmatpush1.msra.mxu0 %v582
        %619 = vmatprep.subr.mxu0 0.0
        %620 = vmatpush1.msra.mxu0 %v581
        %621 = vmatprep.subr.mxu0 0.0
        %622 = vmatpush1.msra.mxu0 %v580
        %623 = vmatprep.subr.mxu0 0.0
        %624 = vmatpush1.msra.mxu0 %v579
        %625 = vmatprep.subr.mxu0 0.0
        %626 = vmatpush1.msra.mxu0 %v578
        %627 = vmatprep.subr.mxu0 0.0
        %628 = vmatpush1.msra.mxu0 %v577
        %629 = vmatprep.subr.mxu0 0.0
        %630 = vmatpush1.msra.mxu0 %v576
        %631 = vmatprep.subr.mxu0 0.0
        %632 = vmatpush2.msra.mxu0 0.0
        %633 = vmatprep.subr.mxu0 0.0
        %634 = vmatpush2.msra.mxu0 0.0
        %635 = vmatprep.subr.mxu0 0.0
        %636 = vmatpush2.msra.mxu0 0.0
        %637 = vmatprep.subr.mxu0 0.0
        %638 = vmatpush2.msra.mxu0 0.0
        %639 = vmatprep.subr.mxu0 0.0
        %640 = vmatpush2.msra.mxu0 0.0
        %641 = vmatprep.subr.mxu0 0.0
        %642 = vmatpush2.msra.mxu0 0.0
        %643 = vmatprep.subr.mxu0 0.0
        %644 = vmatpush2.msra.mxu0 0.0
        %645 = vmatprep.subr.mxu0 0.0
        %646 = vmatpush2.msra.mxu0 0.0
        %647 = vmatprep.subr.mxu0 0.0
        %648 = vmatpush2.msra.mxu0 0.0
        %649 = vmatprep.subr.mxu0 0.0
        %650 = vmatpush2.msra.mxu0 0.0
        %651 = vmatprep.subr.mxu0 0.0
        %652 = vmatpush2.msra.mxu0 0.0
        %653 = vmatprep.subr.mxu0 0.0
        %654 = vmatpush2.msra.mxu0 0.0
        %655 = vmatprep.subr.mxu0 0.0
        %656 = vmatpush2.msra.mxu0 0.0
        %657 = vmatprep.subr.mxu0 0.0
        %658 = vmatpush2.msra.mxu0 0.0
        %659 = vmatprep.subr.mxu0 0.0
        %660 = vmatpush2.msra.mxu0 0.0
        %661 = vmatprep.subr.mxu0 0.0
        %662 = vmatpush2.msra.mxu0 0.0
        %663 = vmatprep.mubr.f32.mxu0 0.0
        %664 = vmatmul.mubr.f32.gmra.mxu0 %v575
        %v665 = vpop.f32.mrf.mxu0
        %v666 = vadd.f32 %v597, %v665
        %v667 = vpop.f32.mrf.mxu0
        %668 = vdwg.mxu0
        %v669 = vmax.f32 %v666, 0.0
        %v670 = vld [vmem:[#allocation7] sm:$0xff]
        %v671 = vld [vmem:[#allocation7 + $0x8] sm:$0xff]
        %v672 = vld [vmem:[#allocation7 + $0x10] sm:$0xff]
        %v673 = vld [vmem:[#allocation7 + $0x18] sm:$0xff]
        %v674 = vld [vmem:[#allocation7 + $0x20] sm:$0xff]
        %v675 = vld [vmem:[#allocation7 + $0x28] sm:$0xff]
        %v676 = vld [vmem:[#allocation7 + $0x30] sm:$0xff]
        %v677 = vld [vmem:[#allocation7 + $0x38] sm:$0xff]
        %v678 = vld [vmem:[#allocation7 + $0x40] sm:$0xff]
        %v679 = vld [vmem:[#allocation7 + $0x48] sm:$0xff]
        %v680 = vld [vmem:[#allocation7 + $0x50] sm:$0xff]
        %v681 = vld [vmem:[#allocation7 + $0x58] sm:$0xff]
        %v682 = vld [vmem:[#allocation7 + $0x60] sm:$0xff]
        %v683 = vld [vmem:[#allocation7 + $0x68] sm:$0xff]
        %v684 = vld [vmem:[#allocation7 + $0x70] sm:$0xff]
        %v685 = vld [vmem:[#allocation7 + $0x78] sm:$0xff]
        %v686 = vld [vmem:[%s8] sm:$0x1]
        %v688 = vlaneseq
        %v689 = vshrl.u32 %v688, 7
        %v690 = vsub.s32 0, %v689
        %v691 = vrot.slane %v686, %v690
        %693 = vmatprep.subr.mxu0 0.0
        %694 = vmatpush1.msra.mxu0 %v685
        %695 = vmatprep.subr.mxu0 0.0
        %696 = vmatpush1.msra.mxu0 %v684
        %697 = vmatprep.subr.mxu0 0.0
        %698 = vmatpush1.msra.mxu0 %v683
        %699 = vmatprep.subr.mxu0 0.0
        %700 = vmatpush1.msra.mxu0 %v682
        %701 = vmatprep.subr.mxu0 0.0
        %702 = vmatpush1.msra.mxu0 %v681
        %703 = vmatprep.subr.mxu0 0.0
        %704 = vmatpush1.msra.mxu0 %v680
        %705 = vmatprep.subr.mxu0 0.0
        %706 = vmatpush1.msra.mxu0 %v679
        %707 = vmatprep.subr.mxu0 0.0
        %708 = vmatpush1.msra.mxu0 %v678
        %709 = vmatprep.subr.mxu0 0.0
        %710 = vmatpush1.msra.mxu0 %v677
        %711 = vmatprep.subr.mxu0 0.0
        %712 = vmatpush1.msra.mxu0 %v676
        %713 = vmatprep.subr.mxu0 0.0
        %714 = vmatpush1.msra.mxu0 %v675
        %715 = vmatprep.subr.mxu0 0.0
        %716 = vmatpush1.msra.mxu0 %v674
        %717 = vmatprep.subr.mxu0 0.0
        %718 = vmatpush1.msra.mxu0 %v673
        %719 = vmatprep.subr.mxu0 0.0
        %720 = vmatpush1.msra.mxu0 %v672
        %721 = vmatprep.subr.mxu0 0.0
        %722 = vmatpush1.msra.mxu0 %v671
        %723 = vmatprep.subr.mxu0 0.0
        %724 = vmatpush1.msra.mxu0 %v670
        %725 = vmatprep.subr.mxu0 0.0
        %726 = vmatpush2.msra.mxu0 0.0
        %727 = vmatprep.subr.mxu0 0.0
        %728 = vmatpush2.msra.mxu0 0.0
        %729 = vmatprep.subr.mxu0 0.0
        %730 = vmatpush2.msra.mxu0 0.0
        %731 = vmatprep.subr.mxu0 0.0
        %732 = vmatpush2.msra.mxu0 0.0
        %733 = vmatprep.subr.mxu0 0.0
        %734 = vmatpush2.msra.mxu0 0.0
        %735 = vmatprep.subr.mxu0 0.0
        %736 = vmatpush2.msra.mxu0 0.0
        %737 = vmatprep.subr.mxu0 0.0
        %738 = vmatpush2.msra.mxu0 0.0
        %739 = vmatprep.subr.mxu0 0.0
        %740 = vmatpush2.msra.mxu0 0.0
        %741 = vmatprep.subr.mxu0 0.0
        %742 = vmatpush2.msra.mxu0 0.0
        %743 = vmatprep.subr.mxu0 0.0
        %744 = vmatpush2.msra.mxu0 0.0
        %745 = vmatprep.subr.mxu0 0.0
        %746 = vmatpush2.msra.mxu0 0.0
        %747 = vmatprep.subr.mxu0 0.0
        %748 = vmatpush2.msra.mxu0 0.0
        %749 = vmatprep.subr.mxu0 0.0
        %750 = vmatpush2.msra.mxu0 0.0
        %751 = vmatprep.subr.mxu0 0.0
        %752 = vmatpush2.msra.mxu0 0.0
        %753 = vmatprep.subr.mxu0 0.0
        %754 = vmatpush2.msra.mxu0 0.0
        %755 = vmatprep.subr.mxu0 0.0
        %756 = vmatpush2.msra.mxu0 0.0
        %757 = vmatprep.mubr.f32.mxu0 0.0
        %758 = vmatmul.mubr.f32.gmra.mxu0 %v669
        %v759 = vpop.f32.mrf.mxu0
        %v760 = vadd.f32 %v691, %v759
        %v761 = vpop.f32.mrf.mxu0
        %762 = vdwg.mxu0
        %763 = vst [vmem:[%s386] sm:$0xff] %v760
        %p764 = scmp.lt.s32.totalorder %s23, 1
        %s765 = scalar_select %p764, %s23, 1
        %s766 = smul.addr %s765, 8
        %s767 = scalar_lea.vmem %s9, %s766
        // Predicated region
        $region73: #{_forward.1} parent=55 // pred_check
          %p768 = pneg %p235
        $region74: #{_forward.1} parent=55 // pred_check_branch
          %770 = sbr.rel (%p768) target = $region76
        $region75: #{_forward.1} parent=55 // pred_region
          _
        $region76: #{_forward.1} parent=55 // pred_fallthru
          _
      $region56: #{_forward.1} parent=5 // pred_fallthru
        _
      %p771 = scmp.le.s32.totalorder 2, %s18
      // Predicated region
      $region77: #{_forward.1} parent=5 // pred_check
        %p772 = pneg %p771
      $region78: #{_forward.1} parent=5 // pred_check_branch
        %774 = sbr.rel (%p772) target = $region80
      $region79: #{_forward.1} parent=5 // pred_region
        %s775 = ssub.s32 %s18, 2
        // Predicated region
        $region81: #{_forward.1} parent=79 // pred_check
          %p776 = pneg %p241
        $region82: #{_forward.1} parent=79 // pred_check_branch
          %778 = sbr.rel (%p776) target = $region84
        $region83: #{_forward.1} parent=79 // pred_region
          %p779 = scmp.lt.s32.totalorder %s24, 1
          %s780 = scalar_select %p779, %s24, 1
          %s781 = smul.addr %s780, 8
          %s782 = scalar_lea.vmem %s9, %s781
        $region84: #{_forward.1} parent=79 // pred_fallthru
          _
      $region80: #{_forward.1} parent=5 // pred_fallthru
        _
    $region6: #{_forward.1} parent=1 // loop_footer
      %s22 = sadd.s32 1, %s18
    $region7: #{_forward.1} parent=1 // loop_footer_branch
      %17 = sbr.rel target = $region3
    $region8: #{_forward.1} parent=1 // loop_exit
      _
    %783 = vsyncpa [#allocation3], 1
    %s784 = scalar_lea.sflag [#allocation3], 1
    %785 = vsyncpa %s784, 1
    %786 = vsyncpa [#allocation5], 1
    %787 = vsyncpa [#allocation8], 1

</llo_original>
